<compile_context>
chip_gen: v7x
topology: tpu7x:2x2x1
jax: 0.10.0
libtpu: 0.0.40
codegen_flags: <defaults>
</compile_context>

<pallas_src>
import functools

import jax
import jax.numpy as jnp
from jax import lax
from jax.experimental import pallas as pl
from jax.experimental.pallas import tpu as pltpu


def _round_up(n, m):
    return ((n + m - 1) // m) * m


def _vmem_budget_bytes():
    """Per-TensorCore VMEM budget, leaving headroom below physical capacity."""
    try:
        kind = jax.devices()[0].device_kind.lower()
    except Exception:
        kind = ""
    if "v7" in kind:          # v7x: 64 MiB VMEM per TensorCore
        return 56 << 20
    return 100 << 20          # v5e / v6e: 128 MiB per TensorCore


def _rnn_chunk_kernel(xproj_ref, whh_t_ref, hseq_ref, h_scratch,
                      *, t_chunk, activation, unroll):
    """One grid step = `t_chunk` timesteps of the recurrence for one batch block.

    xproj_ref : (t_chunk, Bblk, H_pad)  x@W_xh^T + b_xh + b_hh (+ h0@W_hh^T at t==0)
    whh_t_ref : (H_pad, H_pad)          W_hh^T (bf16 by default), single-buffered
    hseq_ref  : (t_chunk, Bblk, H_pad)  output hidden states (f32)
    h_scratch : (Bblk, H_pad) f32       hidden state carried across time-grid steps
    """
    # grid = (batch_blocks, time_blocks); re-init the carry at the start of each
    # batch block's time sweep.  h0 (if any) was folded into xproj[0] by the wrapper.
    @pl.when(pl.program_id(1) == 0)
    def _():
        h_scratch[...] = jnp.zeros_like(h_scratch)

    act = jnp.tanh if activation == "tanh" else (lambda z: jnp.maximum(z, 0.0))

    # TODO(synk): for very small hidden sizes the weight could be held resident in
    # the MXU via pltpu.matmul_push_rhs / matmul_acc_lhs / matmul_pop; we keep the
    # portable jnp.dot path here.
    def step(t, h):
        # bf16 operands (LHS cast only), f32 accumulate; carried state stays f32.
        pre = jnp.dot(h.astype(whh_t_ref.dtype), whh_t_ref[...],
                      preferred_element_type=jnp.float32)
        h_new = act(pre + xproj_ref[t].astype(jnp.float32))
        hseq_ref[t] = h_new.astype(hseq_ref.dtype)
        return h_new

    h_scratch[...] = lax.fori_loop(0, t_chunk, step, h_scratch[...], unroll=unroll)


def rnn_forward(x, W_xh, b_xh, W_hh, b_hh, h0=None, *,
                activation="tanh", t_chunk=16, matmul_dtype=jnp.bfloat16):
    """x: (seq_len, batch, input_size). Returns (h_seq, h_last)."""
    seq_len, batch, input_size = x.shape
    hidden = W_hh.shape[0]
    f32 = jnp.float32

    # --- padding for lane/sublane-dense layouts --------------------------------
    h_pad = _round_up(hidden, 128)              # lane-dense stores (no vst.msk)
    if batch >= 16:
        b_pad = _round_up(batch, 16)
        b_block = b_pad // 2                    # 2 batch blocks -> one per TC on v7x
    else:
        b_pad = _round_up(max(batch, 8), 8)
        b_block = b_pad
    b_blocks = b_pad // b_block

    # --- VMEM budgeting / t_chunk selection -------------------------------------
    mm_bytes = jnp.dtype(matmul_dtype).itemsize
    w_bytes = h_pad * h_pad * mm_bytes
    per_step = b_block * h_pad

    def vmem_needed(tc):
        return (w_bytes                              # W_hh^T, single-buffered
                + per_step * 4                       # carried hidden scratch (f32)
                + 2 * tc * per_step * mm_bytes       # xproj block, double-buffered
                + 2 * tc * per_step * 4)             # h_seq out block, double-buffered

    budget = _vmem_budget_bytes()
    t_chunk = max(1, min(int(t_chunk), seq_len))
    while t_chunk > 1 and vmem_needed(t_chunk) > budget:
        t_chunk //= 2
    t_pad = _round_up(seq_len, t_chunk)
    vmem_limit = int(min(max(vmem_needed(t_chunk) * 3 // 2, 32 << 20), budget))

    # --- padded parameters (pad BEFORE the big projection GEMM) -----------------
    whh_t = jnp.zeros((h_pad, h_pad), f32).at[:hidden, :hidden].set(
        W_hh.astype(f32).T).astype(matmul_dtype)
    wxh_t = jnp.zeros((input_size, h_pad), f32).at[:, :hidden].set(
        W_xh.astype(f32).T).astype(matmul_dtype)
    bias = jnp.zeros((h_pad,), f32).at[:hidden].set((b_xh + b_hh).astype(f32))

    x_pad = jnp.zeros((t_pad, b_pad, input_size), matmul_dtype)
    x_pad = x_pad.at[:seq_len, :batch, :].set(x.astype(matmul_dtype))

    # Hoisted, time-parallel input projection with both biases folded in: one big
    # MXU-saturating GEMM (bf16 operands, f32 accumulate) written directly in the
    # padded (t_pad, b_pad, h_pad) layout.
    xproj = jnp.dot(x_pad.reshape(t_pad * b_pad, input_size), wxh_t,
                    preferred_element_type=f32).reshape(t_pad, b_pad, h_pad) + bias

    # Fold h0 @ W_hh^T into xproj[0]; the kernel zero-inits its carried state, so
    # the h0 input (and its resident VMEM buffer / DMA) disappears entirely.
    if h0 is not None:
        h0_pad = jnp.zeros((b_pad, h_pad), matmul_dtype).at[:batch, :hidden].set(
            h0.reshape(batch, hidden).astype(matmul_dtype))
        xproj = xproj.at[0].add(jnp.dot(h0_pad, whh_t, preferred_element_type=f32))

    xproj = xproj.astype(matmul_dtype)   # halves the streamed-operand HBM traffic

    # Full unroll for small tiles; partial unroll once b_block*h_pad gets large to
    # avoid spilling the 64-vreg file.
    unroll = t_chunk if (b_block * h_pad) <= 8 * 1024 else min(8, t_chunk)

    kernel = functools.partial(_rnn_chunk_kernel, t_chunk=t_chunk,
                               activation=activation, unroll=unroll)

    grid = (b_blocks, t_pad // t_chunk)

    h_seq_pad = pl.pallas_call(
        kernel,
        out_shape=jax.ShapeDtypeStruct((t_pad, b_pad, h_pad), f32),
        grid_spec=pltpu.PrefetchScalarGridSpec(
            num_scalar_prefetch=0,
            grid=grid,
            in_specs=[
                # time-blocked, batch-blocked, pipelined input projection
                pl.BlockSpec((t_chunk, b_block, h_pad), lambda b, t: (t, b, 0)),
                # resident recurrent weight: constant block index, single-buffered
                pl.BlockSpec((h_pad, h_pad), lambda b, t: (0, 0),
                             pipeline_mode=pl.Buffered(1)),
            ],
            out_specs=pl.BlockSpec((t_chunk, b_block, h_pad),
                                   lambda b, t: (t, b, 0)),
            scratch_shapes=[pltpu.VMEM((b_block, h_pad), f32)],   # carried hidden
        ),
        compiler_params=pltpu.CompilerParams(
            # batch blocks are independent (megacore-parallel on v7x);
            # the time recurrence is inherently serial.
            dimension_semantics=("parallel", "arbitrary"),
            vmem_limit_bytes=vmem_limit),
    )(xproj, whh_t)

    h_seq = h_seq_pad[:seq_len, :batch, :hidden].astype(x.dtype)
    h_last = h_seq[seq_len - 1:seq_len]     # free view; no extra kernel output needed
    return h_seq, h_last


def rnn_reference(x, W_xh, b_xh, W_hh, b_hh, h0=None, activation="tanh"):
    """Pure-JAX reference mirroring the PyTorch forward loop."""
    batch = x.shape[1]
    hidden = W_hh.shape[0]
    act = jnp.tanh if activation == "tanh" else (lambda z: jnp.maximum(z, 0.0))
    h = (jnp.zeros((batch, hidden), x.dtype) if h0 is None
         else h0.reshape(batch, hidden).astype(x.dtype))

    def step(h, xt):
        h_new = act(h @ W_hh.T + b_hh + xt @ W_xh.T + b_xh)
        return h_new, h_new

    h_last, h_seq = lax.scan(step, h, x)
    return h_seq, h_last[None]


if __name__ == "__main__":
    seq_len, batch, input_size, hidden = 8, 2, 4, 32

    key = jax.random.PRNGKey(0)
    kx, kh, k1, k2, k3, k4 = jax.random.split(key, 6)

    # Deterministic parameter init (PyTorch nn.Linear-style uniform bounds).
    bound_h = 1.0 / jnp.sqrt(hidden)
    bound_x = 1.0 / jnp.sqrt(input_size)
    W_hh = jax.random.uniform(k1, (hidden, hidden), jnp.float32, -bound_h, bound_h)
    b_hh = jax.random.uniform(k2, (hidden,), jnp.float32, -bound_h, bound_h)
    W_xh = jax.random.uniform(k3, (hidden, input_size), jnp.float32, -bound_x, bound_x)
    b_xh = jax.random.uniform(k4, (hidden,), jnp.float32, -bound_x, bound_x)

    x = jax.random.normal(kx, (seq_len, batch, input_size), jnp.float32)
    h0 = 0.1 * jax.random.normal(kh, (1, batch, hidden), jnp.float32)

    # 1) default path: bf16 recurrent weight / projection, f32 carry & accumulate
    h_seq, h_last = rnn_forward(x, W_xh, b_xh, W_hh, b_hh)
    jax.block_until_ready((h_seq, h_last))
    h_seq_ref, h_last_ref = rnn_reference(x, W_xh, b_xh, W_hh, b_hh)
    assert h_seq.shape == (seq_len, batch, hidden)
    assert h_last.shape == (1, batch, hidden)
    assert jnp.allclose(h_seq, h_seq_ref, atol=3e-2, rtol=3e-2)
    assert jnp.allclose(h_last, h_last_ref, atol=3e-2, rtol=3e-2)

    # 2) f32 matmul path with a provided initial hidden state (tighter tolerance)
    h_seq32, h_last32 = rnn_forward(x, W_xh, b_xh, W_hh, b_hh, h0,
                                    matmul_dtype=jnp.float32)
    jax.block_until_ready((h_seq32, h_last32))
    h_seq_ref32, h_last_ref32 = rnn_reference(x, W_xh, b_xh, W_hh, b_hh, h0)
    assert jnp.allclose(h_seq32, h_seq_ref32, atol=2e-2, rtol=2e-2)
    assert jnp.allclose(h_last32, h_last_ref32, atol=2e-2, rtol=2e-2)

    # 3) relu activation path
    h_seq_r, h_last_r = rnn_forward(x, W_xh, b_xh, W_hh, b_hh, activation="relu")
    jax.block_until_ready((h_seq_r, h_last_r))
    h_seq_ref_r, h_last_ref_r = rnn_reference(x, W_xh, b_xh, W_hh, b_hh,
                                              activation="relu")
    assert jnp.allclose(h_seq_r, h_seq_ref_r, atol=3e-2, rtol=3e-2)
    assert jnp.allclose(h_last_r, h_last_ref_r, atol=3e-2, rtol=3e-2)

    print("KERNEL_OK")
</pallas_src>

<mosaic_0001>
module attributes {stable_mosaic.version = 11 : i64} {
  func.func @_rnn_chunk_kernel(%arg0: i32, %arg1: i32, %arg2: memref<8x8x128xbf16, #tpu.memory_space<vmem>>, %arg3: memref<128x128xbf16, #tpu.memory_space<vmem>>, %arg4: memref<8x8x128xf32, #tpu.memory_space<vmem>>, %arg5: memref<8x128xf32, #tpu.memory_space<vmem>>) attributes {dimension_semantics = [#tpu.dimension_semantics<parallel>, #tpu.dimension_semantics<arbitrary>], iteration_bounds = array<i64: 1, 1>, scalar_prefetch = 0 : i64, scratch_operands = 1 : i64, tpu.core_type = #tpu.core_type<tc>, window_params = [{transform_indices = @transform_0, window_bounds = array<i64: 8, 8, 128>}, {pipeline_mode = #tpu.pipeline_mode<synchronous>, transform_indices = @transform_1, window_bounds = array<i64: 128, 128>}, {transform_indices = @transform_2, window_bounds = array<i64: 8, 8, 128>}]} {
    %c0_i32 = arith.constant 0 : i32
    %0 = arith.cmpi eq, %arg1, %c0_i32 : i32
    %1 = arith.extui %0 : i1 to i32
    %c0_i32_0 = arith.constant 0 : i32
    %2 = arith.cmpi ne, %1, %c0_i32_0 : i32
    scf.if %2 {
      %cst_60 = arith.constant 0.000000e+00 : f32
      %109 = vector.broadcast %cst_60 : f32 to vector<8x128xf32>
      %c0_61 = arith.constant 0 : index
      %c0_62 = arith.constant 0 : index
      %110 = vector.load %arg5[%c0_61, %c0_62] : memref<8x128xf32, #tpu.memory_space<vmem>>, vector<8x128xf32>
      tpu.vector_store %arg5[%c0_61, %c0_62], %109 {strides = array<i32>} : memref<8x128xf32, #tpu.memory_space<vmem>>, vector<8x128xf32>,
    } else {
    }
    %c0 = arith.constant 0 : index
    %c0_1 = arith.constant 0 : index
    %3 = vector.load %arg5[%c0, %c0_1] : memref<8x128xf32, #tpu.memory_space<vmem>>, vector<8x128xf32>
    %c0_i32_2 = arith.constant 0 : i32
    %4 = arith.truncf %3 : vector<8x128xf32> to vector<8x128xbf16>
    %c0_3 = arith.constant 0 : index
    %c0_4 = arith.constant 0 : index
    %5 = vector.load %arg3[%c0_3, %c0_4] : memref<128x128xbf16, #tpu.memory_space<vmem>>, vector<128x128xbf16>
    %cst = arith.constant dense<0.000000e+00> : vector<8x128xf32>
    %6 = tpu.matmul %4, %5, %cst {dimension_numbers = #tpu.dot_dimension_numbers<[1], [0], [0], [1], [0, 0, 1, 1], [], []>} : vector<8x128xbf16>, vector<128x128xbf16>, vector<8x128xf32> -> vector<8x128xf32>
    %7 = arith.index_cast %c0_i32_2 : i32 to index
    %c0_5 = arith.constant 0 : index
    %c0_6 = arith.constant 0 : index
    %8 = vector.load %arg2[%7, %c0_5, %c0_6] : memref<8x8x128xbf16, #tpu.memory_space<vmem>>, vector<1x8x128xbf16>
    %9 = vector.shape_cast %8 : vector<1x8x128xbf16> to vector<8x128xbf16>
    %10 = arith.extf %9 : vector<8x128xbf16> to vector<8x128xf32>
    %11 = arith.addf %6, %10 : vector<8x128xf32>
    %12 = math.tanh %11 : vector<8x128xf32>
    %13 = arith.index_cast %c0_i32_2 : i32 to index
    %c0_7 = arith.constant 0 : index
    %c0_8 = arith.constant 0 : index
    %14 = vector.load %arg4[%13, %c0_7, %c0_8] : memref<8x8x128xf32, #tpu.memory_space<vmem>>, vector<1x8x128xf32>
    %15 = vector.shape_cast %14 : vector<1x8x128xf32> to vector<8x128xf32>
    %16 = vector.shape_cast %12 : vector<8x128xf32> to vector<1x8x128xf32>
    tpu.vector_store %arg4[%13, %c0_7, %c0_8], %16 {strides = array<i32>} : memref<8x8x128xf32, #tpu.memory_space<vmem>>, vector<1x8x128xf32>,
    %c1_i32 = arith.constant 1 : i32
    %17 = arith.truncf %12 : vector<8x128xf32> to vector<8x128xbf16>
    %c0_9 = arith.constant 0 : index
    %c0_10 = arith.constant 0 : index
    %18 = vector.load %arg3[%c0_9, %c0_10] : memref<128x128xbf16, #tpu.memory_space<vmem>>, vector<128x128xbf16>
    %cst_11 = arith.constant dense<0.000000e+00> : vector<8x128xf32>
    %19 = tpu.matmul %17, %18, %cst_11 {dimension_numbers = #tpu.dot_dimension_numbers<[1], [0], [0], [1], [0, 0, 1, 1], [], []>} : vector<8x128xbf16>, vector<128x128xbf16>, vector<8x128xf32> -> vector<8x128xf32>
    %20 = arith.index_cast %c1_i32 : i32 to index
    %c0_12 = arith.constant 0 : index
    %c0_13 = arith.constant 0 : index
    %21 = vector.load %arg2[%20, %c0_12, %c0_13] : memref<8x8x128xbf16, #tpu.memory_space<vmem>>, vector<1x8x128xbf16>
    %22 = vector.shape_cast %21 : vector<1x8x128xbf16> to vector<8x128xbf16>
    %23 = arith.extf %22 : vector<8x128xbf16> to vector<8x128xf32>
    %24 = arith.addf %19, %23 : vector<8x128xf32>
    %25 = math.tanh %24 : vector<8x128xf32>
    %26 = arith.index_cast %c1_i32 : i32 to index
    %c0_14 = arith.constant 0 : index
    %c0_15 = arith.constant 0 : index
    %27 = vector.load %arg4[%26, %c0_14, %c0_15] : memref<8x8x128xf32, #tpu.memory_space<vmem>>, vector<1x8x128xf32>
    %28 = vector.shape_cast %27 : vector<1x8x128xf32> to vector<8x128xf32>
    %29 = vector.shape_cast %25 : vector<8x128xf32> to vector<1x8x128xf32>
    tpu.vector_store %arg4[%26, %c0_14, %c0_15], %29 {strides = array<i32>} : memref<8x8x128xf32, #tpu.memory_space<vmem>>, vector<1x8x128xf32>,
    %c2_i32 = arith.constant 2 : i32
    %30 = arith.truncf %25 : vector<8x128xf32> to vector<8x128xbf16>
    %c0_16 = arith.constant 0 : index
    %c0_17 = arith.constant 0 : index
    %31 = vector.load %arg3[%c0_16, %c0_17] : memref<128x128xbf16, #tpu.memory_space<vmem>>, vector<128x128xbf16>
    %cst_18 = arith.constant dense<0.000000e+00> : vector<8x128xf32>
    %32 = tpu.matmul %30, %31, %cst_18 {dimension_numbers = #tpu.dot_dimension_numbers<[1], [0], [0], [1], [0, 0, 1, 1], [], []>} : vector<8x128xbf16>, vector<128x128xbf16>, vector<8x128xf32> -> vector<8x128xf32>
    %33 = arith.index_cast %c2_i32 : i32 to index
    %c0_19 = arith.constant 0 : index
    %c0_20 = arith.constant 0 : index
    %34 = vector.load %arg2[%33, %c0_19, %c0_20] : memref<8x8x128xbf16, #tpu.memory_space<vmem>>, vector<1x8x128xbf16>
    %35 = vector.shape_cast %34 : vector<1x8x128xbf16> to vector<8x128xbf16>
    %36 = arith.extf %35 : vector<8x128xbf16> to vector<8x128xf32>
    %37 = arith.addf %32, %36 : vector<8x128xf32>
    %38 = math.tanh %37 : vector<8x128xf32>
    %39 = arith.index_cast %c2_i32 : i32 to index
    %c0_21 = arith.constant 0 : index
    %c0_22 = arith.constant 0 : index
    %40 = vector.load %arg4[%39, %c0_21, %c0_22] : memref<8x8x128xf32, #tpu.memory_space<vmem>>, vector<1x8x128xf32>
    %41 = vector.shape_cast %40 : vector<1x8x128xf32> to vector<8x128xf32>
    %42 = vector.shape_cast %38 : vector<8x128xf32> to vector<1x8x128xf32>
    tpu.vector_store %arg4[%39, %c0_21, %c0_22], %42 {strides = array<i32>} : memref<8x8x128xf32, #tpu.memory_space<vmem>>, vector<1x8x128xf32>,
    %c3_i32 = arith.constant 3 : i32
    %43 = arith.truncf %38 : vector<8x128xf32> to vector<8x128xbf16>
    %c0_23 = arith.constant 0 : index
    %c0_24 = arith.constant 0 : index
    %44 = vector.load %arg3[%c0_23, %c0_24] : memref<128x128xbf16, #tpu.memory_space<vmem>>, vector<128x128xbf16>
    %cst_25 = arith.constant dense<0.000000e+00> : vector<8x128xf32>
    %45 = tpu.matmul %43, %44, %cst_25 {dimension_numbers = #tpu.dot_dimension_numbers<[1], [0], [0], [1], [0, 0, 1, 1], [], []>} : vector<8x128xbf16>, vector<128x128xbf16>, vector<8x128xf32> -> vector<8x128xf32>
    %46 = arith.index_cast %c3_i32 : i32 to index
    %c0_26 = arith.constant 0 : index
    %c0_27 = arith.constant 0 : index
    %47 = vector.load %arg2[%46, %c0_26, %c0_27] : memref<8x8x128xbf16, #tpu.memory_space<vmem>>, vector<1x8x128xbf16>
    %48 = vector.shape_cast %47 : vector<1x8x128xbf16> to vector<8x128xbf16>
    %49 = arith.extf %48 : vector<8x128xbf16> to vector<8x128xf32>
    %50 = arith.addf %45, %49 : vector<8x128xf32>
    %51 = math.tanh %50 : vector<8x128xf32>
    %52 = arith.index_cast %c3_i32 : i32 to index
    %c0_28 = arith.constant 0 : index
    %c0_29 = arith.constant 0 : index
    %53 = vector.load %arg4[%52, %c0_28, %c0_29] : memref<8x8x128xf32, #tpu.memory_space<vmem>>, vector<1x8x128xf32>
    %54 = vector.shape_cast %53 : vector<1x8x128xf32> to vector<8x128xf32>
    %55 = vector.shape_cast %51 : vector<8x128xf32> to vector<1x8x128xf32>
    tpu.vector_store %arg4[%52, %c0_28, %c0_29], %55 {strides = array<i32>} : memref<8x8x128xf32, #tpu.memory_space<vmem>>, vector<1x8x128xf32>,
    %c4_i32 = arith.constant 4 : i32
    %56 = arith.truncf %51 : vector<8x128xf32> to vector<8x128xbf16>
    %c0_30 = arith.constant 0 : index
    %c0_31 = arith.constant 0 : index
    %57 = vector.load %arg3[%c0_30, %c0_31] : memref<128x128xbf16, #tpu.memory_space<vmem>>, vector<128x128xbf16>
    %cst_32 = arith.constant dense<0.000000e+00> : vector<8x128xf32>
    %58 = tpu.matmul %56, %57, %cst_32 {dimension_numbers = #tpu.dot_dimension_numbers<[1], [0], [0], [1], [0, 0, 1, 1], [], []>} : vector<8x128xbf16>, vector<128x128xbf16>, vector<8x128xf32> -> vector<8x128xf32>
    %59 = arith.index_cast %c4_i32 : i32 to index
    %c0_33 = arith.constant 0 : index
    %c0_34 = arith.constant 0 : index
    %60 = vector.load %arg2[%59, %c0_33, %c0_34] : memref<8x8x128xbf16, #tpu.memory_space<vmem>>, vector<1x8x128xbf16>
    %61 = vector.shape_cast %60 : vector<1x8x128xbf16> to vector<8x128xbf16>
    %62 = arith.extf %61 : vector<8x128xbf16> to vector<8x128xf32>
    %63 = arith.addf %58, %62 : vector<8x128xf32>
    %64 = math.tanh %63 : vector<8x128xf32>
    %65 = arith.index_cast %c4_i32 : i32 to index
    %c0_35 = arith.constant 0 : index
    %c0_36 = arith.constant 0 : index
    %66 = vector.load %arg4[%65, %c0_35, %c0_36] : memref<8x8x128xf32, #tpu.memory_space<vmem>>, vector<1x8x128xf32>
    %67 = vector.shape_cast %66 : vector<1x8x128xf32> to vector<8x128xf32>
    %68 = vector.shape_cast %64 : vector<8x128xf32> to vector<1x8x128xf32>
    tpu.vector_store %arg4[%65, %c0_35, %c0_36], %68 {strides = array<i32>} : memref<8x8x128xf32, #tpu.memory_space<vmem>>, vector<1x8x128xf32>,
    %c5_i32 = arith.constant 5 : i32
    %69 = arith.truncf %64 : vector<8x128xf32> to vector<8x128xbf16>
    %c0_37 = arith.constant 0 : index
    %c0_38 = arith.constant 0 : index
    %70 = vector.load %arg3[%c0_37, %c0_38] : memref<128x128xbf16, #tpu.memory_space<vmem>>, vector<128x128xbf16>
    %cst_39 = arith.constant dense<0.000000e+00> : vector<8x128xf32>
    %71 = tpu.matmul %69, %70, %cst_39 {dimension_numbers = #tpu.dot_dimension_numbers<[1], [0], [0], [1], [0, 0, 1, 1], [], []>} : vector<8x128xbf16>, vector<128x128xbf16>, vector<8x128xf32> -> vector<8x128xf32>
    %72 = arith.index_cast %c5_i32 : i32 to index
    %c0_40 = arith.constant 0 : index
    %c0_41 = arith.constant 0 : index
    %73 = vector.load %arg2[%72, %c0_40, %c0_41] : memref<8x8x128xbf16, #tpu.memory_space<vmem>>, vector<1x8x128xbf16>
    %74 = vector.shape_cast %73 : vector<1x8x128xbf16> to vector<8x128xbf16>
    %75 = arith.extf %74 : vector<8x128xbf16> to vector<8x128xf32>
    %76 = arith.addf %71, %75 : vector<8x128xf32>
    %77 = math.tanh %76 : vector<8x128xf32>
    %78 = arith.index_cast %c5_i32 : i32 to index
    %c0_42 = arith.constant 0 : index
    %c0_43 = arith.constant 0 : index
    %79 = vector.load %arg4[%78, %c0_42, %c0_43] : memref<8x8x128xf32, #tpu.memory_space<vmem>>, vector<1x8x128xf32>
    %80 = vector.shape_cast %79 : vector<1x8x128xf32> to vector<8x128xf32>
    %81 = vector.shape_cast %77 : vector<8x128xf32> to vector<1x8x128xf32>
    tpu.vector_store %arg4[%78, %c0_42, %c0_43], %81 {strides = array<i32>} : memref<8x8x128xf32, #tpu.memory_space<vmem>>, vector<1x8x128xf32>,
    %c6_i32 = arith.constant 6 : i32
    %82 = arith.truncf %77 : vector<8x128xf32> to vector<8x128xbf16>
    %c0_44 = arith.constant 0 : index
    %c0_45 = arith.constant 0 : index
    %83 = vector.load %arg3[%c0_44, %c0_45] : memref<128x128xbf16, #tpu.memory_space<vmem>>, vector<128x128xbf16>
    %cst_46 = arith.constant dense<0.000000e+00> : vector<8x128xf32>
    %84 = tpu.matmul %82, %83, %cst_46 {dimension_numbers = #tpu.dot_dimension_numbers<[1], [0], [0], [1], [0, 0, 1, 1], [], []>} : vector<8x128xbf16>, vector<128x128xbf16>, vector<8x128xf32> -> vector<8x128xf32>
    %85 = arith.index_cast %c6_i32 : i32 to index
    %c0_47 = arith.constant 0 : index
    %c0_48 = arith.constant 0 : index
    %86 = vector.load %arg2[%85, %c0_47, %c0_48] : memref<8x8x128xbf16, #tpu.memory_space<vmem>>, vector<1x8x128xbf16>
    %87 = vector.shape_cast %86 : vector<1x8x128xbf16> to vector<8x128xbf16>
    %88 = arith.extf %87 : vector<8x128xbf16> to vector<8x128xf32>
    %89 = arith.addf %84, %88 : vector<8x128xf32>
    %90 = math.tanh %89 : vector<8x128xf32>
    %91 = arith.index_cast %c6_i32 : i32 to index
    %c0_49 = arith.constant 0 : index
    %c0_50 = arith.constant 0 : index
    %92 = vector.load %arg4[%91, %c0_49, %c0_50] : memref<8x8x128xf32, #tpu.memory_space<vmem>>, vector<1x8x128xf32>
    %93 = vector.shape_cast %92 : vector<1x8x128xf32> to vector<8x128xf32>
    %94 = vector.shape_cast %90 : vector<8x128xf32> to vector<1x8x128xf32>
    tpu.vector_store %arg4[%91, %c0_49, %c0_50], %94 {strides = array<i32>} : memref<8x8x128xf32, #tpu.memory_space<vmem>>, vector<1x8x128xf32>,
    %c7_i32 = arith.constant 7 : i32
    %95 = arith.truncf %90 : vector<8x128xf32> to vector<8x128xbf16>
    %c0_51 = arith.constant 0 : index
    %c0_52 = arith.constant 0 : index
    %96 = vector.load %arg3[%c0_51, %c0_52] : memref<128x128xbf16, #tpu.memory_space<vmem>>, vector<128x128xbf16>
    %cst_53 = arith.constant dense<0.000000e+00> : vector<8x128xf32>
    %97 = tpu.matmul %95, %96, %cst_53 {dimension_numbers = #tpu.dot_dimension_numbers<[1], [0], [0], [1], [0, 0, 1, 1], [], []>} : vector<8x128xbf16>, vector<128x128xbf16>, vector<8x128xf32> -> vector<8x128xf32>
    %98 = arith.index_cast %c7_i32 : i32 to index
    %c0_54 = arith.constant 0 : index
    %c0_55 = arith.constant 0 : index
    %99 = vector.load %arg2[%98, %c0_54, %c0_55] : memref<8x8x128xbf16, #tpu.memory_space<vmem>>, vector<1x8x128xbf16>
    %100 = vector.shape_cast %99 : vector<1x8x128xbf16> to vector<8x128xbf16>
    %101 = arith.extf %100 : vector<8x128xbf16> to vector<8x128xf32>
    %102 = arith.addf %97, %101 : vector<8x128xf32>
    %103 = math.tanh %102 : vector<8x128xf32>
    %104 = arith.index_cast %c7_i32 : i32 to index
    %c0_56 = arith.constant 0 : index
    %c0_57 = arith.constant 0 : index
    %105 = vector.load %arg4[%104, %c0_56, %c0_57] : memref<8x8x128xf32, #tpu.memory_space<vmem>>, vector<1x8x128xf32>
    %106 = vector.shape_cast %105 : vector<1x8x128xf32> to vector<8x128xf32>
    %107 = vector.shape_cast %103 : vector<8x128xf32> to vector<1x8x128xf32>
    tpu.vector_store %arg4[%104, %c0_56, %c0_57], %107 {strides = array<i32>} : memref<8x8x128xf32, #tpu.memory_space<vmem>>, vector<1x8x128xf32>,
    %c8_i32 = arith.constant 8 : i32
    %c0_58 = arith.constant 0 : index
    %c0_59 = arith.constant 0 : index
    %108 = vector.load %arg5[%c0_58, %c0_59] : memref<8x128xf32, #tpu.memory_space<vmem>>, vector<8x128xf32>
    tpu.vector_store %arg5[%c0_58, %c0_59], %103 {strides = array<i32>} : memref<8x128xf32, #tpu.memory_space<vmem>>, vector<8x128xf32>,
    return
  }
  func.func @transform_0(%arg0: i32, %arg1: i32) -> (i32, i32, i32) {
    %c0_i32 = arith.constant 0 : i32
    %c0_i32_0 = arith.constant 0 : i32
    return %arg1, %arg0, %c0_i32 : i32, i32, i32
  }
  func.func @transform_1(%arg0: i32, %arg1: i32) -> (i32, i32) {
    %c0_i32 = arith.constant 0 : i32
    %c0_i32_0 = arith.constant 0 : i32
    %c0_i32_1 = arith.constant 0 : i32
    return %c0_i32, %c0_i32_0 : i32, i32
  }
  func.func @transform_2(%arg0: i32, %arg1: i32) -> (i32, i32, i32) {
    %c0_i32 = arith.constant 0 : i32
    %c0_i32_0 = arith.constant 0 : i32
    return %arg1, %arg0, %c0_i32 : i32, i32, i32
  }
}

</mosaic_0001>

<llo_original>
// kernel: tpu_custom_call.1
$region0: #{tpu_custom_call.1}
  #allocation0 [shape = 'u32[]', space=smem, size = 0x4, offset = 0x4, fixed_abs, tag = 'smem constant byte address 0x4 - core index']
  #allocation1 [shape = 'u32[144,128]{1,0:T(1,128)}', space=vmem, size = 0x12000, scoped, tag = 'internal scratch']
  #allocation2 [shape = 'f32[8,128]{1,0:T(8,128)}', space=vmem, size = 0x1000, scoped, tag = 'scratch operand']
  %s0 = inlined_call_operand.hbm [shape: bf16[8,8,128], index: 0, kind: input, shape index: {}]
  %s1 = inlined_call_operand.hbm [shape: bf16[128,128], index: 1, kind: input, shape index: {}]
  %s2 = inlined_call_operand.hbm [shape: f32[8,8,128], index: 2, kind: output, shape index: {}]
  %s3 = sld [smem:[#allocation0]]
  $region30: #{tpu_custom_call.1} parent=0
    _
  %s5 = ssub.s32 1, %s3
  %s6 = scalar_select 0, %s5, %s3
  $region1: #{tpu_custom_call.1} parent=0
    #allocation3 [shape = 'u8[16384]{0}', space=vmem, size = 0x4000, scoped, tag = 'input window, operand 0, single buffered']
    #allocation4 [shape = 's32[1]{0}', space=sflag, size = 0x4, scoped, tag = 'scoped memory for tpu_custom_call.1']
    #allocation5 [shape = 's32[1]{0}', space=sflag, size = 0x4, scoped, tag = 'scoped memory for tpu_custom_call.1']
    #allocation6 [shape = 'u8[32768]{0}', space=vmem, size = 0x8000, scoped, tag = 'input window, operand 1, single buffered']
    #allocation7 [shape = 's32[1]{0}', space=sflag, size = 0x4, scoped, tag = 'scoped memory for tpu_custom_call.1']
    #allocation8 [shape = 'u8[32768]{0}', space=vmem, size = 0x8000, scoped, tag = 'output window, operand 0, single buffered']
    %7 = vsyncpa [#allocation4], 0
    %8 = vsyncpa [#allocation7], 0
    %9 = vsyncpa [#allocation5], 0
    // Predicated region
    $region2: #{tpu_custom_call.1} parent=1 // pred_check
      _
    $region3: #{tpu_custom_call.1} parent=1 // pred_check_branch
      %11 = sbr.rel (0) target = $region5
    $region4: #{tpu_custom_call.1} parent=1 // pred_region
      %s13 = ssub.s32 512, 512
      %14 = vsyncadd [#allocation4], %s13
      %s15 = sshll.u32 [#allocation3], 4
      %s16 = int_to_ptr.vmem [resolvable:$true] %s15
      %21 = dma.hbm_to_vmem [thread:$0]  %s0, 512, %s16, [#allocation4], 64, 64, 4
    $region5: #{tpu_custom_call.1} parent=1 // pred_fallthru
      _
    // Predicated region
    $region6: #{tpu_custom_call.1} parent=1 // pred_check
      _
    $region7: #{tpu_custom_call.1} parent=1 // pred_check_branch
      %23 = sbr.rel (0) target = $region9
    $region8: #{tpu_custom_call.1} parent=1 // pred_region
      %s25 = ssub.s32 1024, 1024
      %26 = vsyncadd [#allocation7], %s25
      %s27 = sshll.u32 [#allocation6], 4
      %s28 = int_to_ptr.vmem [resolvable:$true] %s27
      %33 = dma.hbm_to_vmem [thread:$0]  %s1, 1024, %s28, [#allocation7], 64, 64, 4
    $region9: #{tpu_custom_call.1} parent=1 // pred_fallthru
      _
    // Predicated region
    $region10: #{tpu_custom_call.1} parent=1 // pred_check
      _
    $region11: #{tpu_custom_call.1} parent=1 // pred_check_branch
      %35 = sbr.rel (0) target = $region13
    $region12: #{tpu_custom_call.1} parent=1 // pred_region
      %36 = dma.done [#allocation4], 512
    $region13: #{tpu_custom_call.1} parent=1 // pred_fallthru
      _
    // Predicated region
    $region14: #{tpu_custom_call.1} parent=1 // pred_check
      _
    $region15: #{tpu_custom_call.1} parent=1 // pred_check_branch
      %38 = sbr.rel (0) target = $region17
    $region16: #{tpu_custom_call.1} parent=1 // pred_region
      %39 = dma.done [#allocation7], 1024
    $region17: #{tpu_custom_call.1} parent=1 // pred_fallthru
      _
    %p41 = scmp.eq.s32.totalorder 0, 0
    // Predicated region
    $region18: #{tpu_custom_call.1} parent=1 // pred_check
      %p42 = pneg %p41
    $region19: #{tpu_custom_call.1} parent=1 // pred_check_branch
      %44 = sbr.rel (%p42) target = $region21
    $region20: #{tpu_custom_call.1} parent=1 // pred_region
      %45 = vst [vmem:[#allocation2] sm:$0xff] 0.0
    $region21: #{tpu_custom_call.1} parent=1 // pred_fallthru
      _
    %v46 = vld [vmem:[#allocation2] sm:$0xff]
    %v47 = vpack.c.bf16 %v46, %v46
    %v48 = vld [vmem:[#allocation6] sm:$0xf]
    %v49 = vld [vmem:[#allocation6 + $0x4] sm:$0xf]
    %v50 = vld [vmem:[#allocation6 + $0x8] sm:$0xf]
    %v51 = vld [vmem:[#allocation6 + $0xc] sm:$0xf]
    %v52 = vld [vmem:[#allocation6 + $0x10] sm:$0xf]
    %v53 = vld [vmem:[#allocation6 + $0x14] sm:$0xf]
    %v54 = vld [vmem:[#allocation6 + $0x18] sm:$0xf]
    %v55 = vld [vmem:[#allocation6 + $0x1c] sm:$0xf]
    %v56 = vld [vmem:[#allocation6 + $0x20] sm:$0xf]
    %v57 = vld [vmem:[#allocation6 + $0x24] sm:$0xf]
    %v58 = vld [vmem:[#allocation6 + $0x28] sm:$0xf]
    %v59 = vld [vmem:[#allocation6 + $0x2c] sm:$0xf]
    %v60 = vld [vmem:[#allocation6 + $0x30] sm:$0xf]
    %v61 = vld [vmem:[#allocation6 + $0x34] sm:$0xf]
    %v62 = vld [vmem:[#allocation6 + $0x38] sm:$0xf]
    %v63 = vld [vmem:[#allocation6 + $0x3c] sm:$0xf]
    %v64 = vld [vmem:[#allocation3] sm:$0xf]
    %v65 = vunpack.c.l.bf16 %v64
    %v82 = vunpack.c.l.b16 %v48
    %v83 = vunpack.c.l.b16 %v49
    %v84 = vunpack.c.l.b16 %v50
    %v85 = vunpack.c.l.b16 %v51
    %v86 = vunpack.c.l.b16 %v52
    %v87 = vunpack.c.l.b16 %v53
    %v88 = vunpack.c.l.b16 %v54
    %v89 = vunpack.c.l.b16 %v55
    %v90 = vunpack.c.l.b16 %v56
    %v91 = vunpack.c.l.b16 %v57
    %v92 = vunpack.c.l.b16 %v58
    %v93 = vunpack.c.l.b16 %v59
    %v94 = vunpack.c.l.b16 %v60
    %v95 = vunpack.c.l.b16 %v61
    %v96 = vunpack.c.l.b16 %v62
    %v97 = vunpack.c.l.b16 %v63
    %v98 = vpack.c.b16 %v83, %v82
    %v99 = vpack.c.b16 %v85, %v84
    %v100 = vpack.c.b16 %v87, %v86
    %v101 = vpack.c.b16 %v89, %v88
    %v102 = vpack.c.b16 %v91, %v90
    %v103 = vpack.c.b16 %v93, %v92
    %v104 = vpack.c.b16 %v95, %v94
    %v105 = vpack.c.b16 %v97, %v96
    %114 = vmatprep.subr.bf16.mxu0 0
    %115 = vmatpush1.bf16.msra.mxu0 %v98
    %116 = vmatprep.subr.bf16.mxu0 0
    %117 = vmatpush1.bf16.msra.mxu0 %v99
    %118 = vmatprep.subr.bf16.mxu0 0
    %119 = vmatpush1.bf16.msra.mxu0 %v100
    %120 = vmatprep.subr.bf16.mxu0 0
    %121 = vmatpush1.bf16.msra.mxu0 %v101
    %122 = vmatprep.subr.bf16.mxu0 0
    %123 = vmatpush1.bf16.msra.mxu0 %v102
    %124 = vmatprep.subr.bf16.mxu0 0
    %125 = vmatpush1.bf16.msra.mxu0 %v103
    %126 = vmatprep.subr.bf16.mxu0 0
    %127 = vmatpush1.bf16.msra.mxu0 %v104
    %128 = vmatprep.subr.bf16.mxu0 0
    %129 = vmatpush1.bf16.msra.mxu0 %v105
    %130 = vmatprep.subr.bf16.mxu0 0
    %131 = vmatpush1.bf16.msra.mxu0 0
    %132 = vmatprep.subr.bf16.mxu0 0
    %133 = vmatpush1.bf16.msra.mxu0 0
    %134 = vmatprep.subr.bf16.mxu0 0
    %135 = vmatpush1.bf16.msra.mxu0 0
    %136 = vmatprep.subr.bf16.mxu0 0
    %137 = vmatpush1.bf16.msra.mxu0 0
    %138 = vmatprep.subr.bf16.mxu0 0
    %139 = vmatpush1.bf16.msra.mxu0 0
    %140 = vmatprep.subr.bf16.mxu0 0
    %141 = vmatpush1.bf16.msra.mxu0 0
    %142 = vmatprep.subr.bf16.mxu0 0
    %143 = vmatpush1.bf16.msra.mxu0 0
    %144 = vmatprep.subr.bf16.mxu0 0
    %145 = vmatpush1.bf16.msra.mxu0 0
    %146 = vmatprep.mubr.bf16.mxu0 0
    %147 = vmatmul.mubr.bf16.gmra.mrb[0].mxu0 %v47
    %v148 = vpop.f32.mrb[0].mxu0
    %v149 = vadd.f32 %v65, %v148
    %v150 = vpop.f32.mrb[0].mxu0
    %v151 = vpop.f32.mrb[0].mxu0
    %v152 = vpop.f32.mrb[0].mxu0
    %153 = vdwg.mxu0
    %v154 = vtanh.pop %v149
    %155 = vst [vmem:[#allocation8] sm:$0xff] %v154
    %v156 = vpack.c.bf16 %v154, %v154
    %v157 = vld [vmem:[#allocation6] sm:$0xf]
    %v158 = vld [vmem:[#allocation6 + $0x4] sm:$0xf]
    %v159 = vld [vmem:[#allocation6 + $0x8] sm:$0xf]
    %v160 = vld [vmem:[#allocation6 + $0xc] sm:$0xf]
    %v161 = vld [vmem:[#allocation6 + $0x10] sm:$0xf]
    %v162 = vld [vmem:[#allocation6 + $0x14] sm:$0xf]
    %v163 = vld [vmem:[#allocation6 + $0x18] sm:$0xf]
    %v164 = vld [vmem:[#allocation6 + $0x1c] sm:$0xf]
    %v165 = vld [vmem:[#allocation6 + $0x20] sm:$0xf]
    %v166 = vld [vmem:[#allocation6 + $0x24] sm:$0xf]
    %v167 = vld [vmem:[#allocation6 + $0x28] sm:$0xf]
    %v168 = vld [vmem:[#allocation6 + $0x2c] sm:$0xf]
    %v169 = vld [vmem:[#allocation6 + $0x30] sm:$0xf]
    %v170 = vld [vmem:[#allocation6 + $0x34] sm:$0xf]
    %v171 = vld [vmem:[#allocation6 + $0x38] sm:$0xf]
    %v172 = vld [vmem:[#allocation6 + $0x3c] sm:$0xf]
    %s173 = scalar_lea.vmem [#allocation3], 4
    %v174 = vld [vmem:[%s173] sm:$0xf]
    %v175 = vunpack.c.l.bf16 %v174
    %v192 = vunpack.c.l.b16 %v157
    %v193 = vunpack.c.l.b16 %v158
    %v194 = vunpack.c.l.b16 %v159
    %v195 = vunpack.c.l.b16 %v160
    %v196 = vunpack.c.l.b16 %v161
    %v197 = vunpack.c.l.b16 %v162
    %v198 = vunpack.c.l.b16 %v163
    %v199 = vunpack.c.l.b16 %v164
    %v200 = vunpack.c.l.b16 %v165
    %v201 = vunpack.c.l.b16 %v166
    %v202 = vunpack.c.l.b16 %v167
    %v203 = vunpack.c.l.b16 %v168
    %v204 = vunpack.c.l.b16 %v169
    %v205 = vunpack.c.l.b16 %v170
    %v206 = vunpack.c.l.b16 %v171
    %v207 = vunpack.c.l.b16 %v172
    %v208 = vpack.c.b16 %v193, %v192
    %v209 = vpack.c.b16 %v195, %v194
    %v210 = vpack.c.b16 %v197, %v196
    %v211 = vpack.c.b16 %v199, %v198
    %v212 = vpack.c.b16 %v201, %v200
    %v213 = vpack.c.b16 %v203, %v202
    %v214 = vpack.c.b16 %v205, %v204
    %v215 = vpack.c.b16 %v207, %v206
    %224 = vmatprep.subr.bf16.mxu0 0
    %225 = vmatpush1.bf16.msra.mxu0 %v208
    %226 = vmatprep.subr.bf16.mxu0 0
    %227 = vmatpush1.bf16.msra.mxu0 %v209
    %228 = vmatprep.subr.bf16.mxu0 0
    %229 = vmatpush1.bf16.msra.mxu0 %v210
    %230 = vmatprep.subr.bf16.mxu0 0
    %231 = vmatpush1.bf16.msra.mxu0 %v211
    %232 = vmatprep.subr.bf16.mxu0 0
    %233 = vmatpush1.bf16.msra.mxu0 %v212
    %234 = vmatprep.subr.bf16.mxu0 0
    %235 = vmatpush1.bf16.msra.mxu0 %v213
    %236 = vmatprep.subr.bf16.mxu0 0
    %237 = vmatpush1.bf16.msra.mxu0 %v214
    %238 = vmatprep.subr.bf16.mxu0 0
    %239 = vmatpush1.bf16.msra.mxu0 %v215
    %240 = vmatprep.subr.bf16.mxu0 0
    %241 = vmatpush1.bf16.msra.mxu0 0
    %242 = vmatprep.subr.bf16.mxu0 0
    %243 = vmatpush1.bf16.msra.mxu0 0
    %244 = vmatprep.subr.bf16.mxu0 0
    %245 = vmatpush1.bf16.msra.mxu0 0
    %246 = vmatprep.subr.bf16.mxu0 0
    %247 = vmatpush1.bf16.msra.mxu0 0
    %248 = vmatprep.subr.bf16.mxu0 0
    %249 = vmatpush1.bf16.msra.mxu0 0
    %250 = vmatprep.subr.bf16.mxu0 0
    %251 = vmatpush1.bf16.msra.mxu0 0
    %252 = vmatprep.subr.bf16.mxu0 0
    %253 = vmatpush1.bf16.msra.mxu0 0
    %254 = vmatprep.subr.bf16.mxu0 0
    %255 = vmatpush1.bf16.msra.mxu0 0
    %256 = vmatprep.mubr.bf16.mxu0 0
    %257 = vmatmul.mubr.bf16.gmra.mrb[0].mxu0 %v156
    %v258 = vpop.f32.mrb[0].mxu0
    %v259 = vadd.f32 %v175, %v258
    %v260 = vpop.f32.mrb[0].mxu0
    %v261 = vpop.f32.mrb[0].mxu0
    %v262 = vpop.f32.mrb[0].mxu0
    %263 = vdwg.mxu0
    %v264 = vtanh.pop %v259
    %s265 = scalar_lea.vmem [#allocation8], 8
    %266 = vst [vmem:[%s265] sm:$0xff] %v264
    %v267 = vpack.c.bf16 %v264, %v264
    %v268 = vld [vmem:[#allocation6] sm:$0xf]
    %v269 = vld [vmem:[#allocation6 + $0x4] sm:$0xf]
    %v270 = vld [vmem:[#allocation6 + $0x8] sm:$0xf]
    %v271 = vld [vmem:[#allocation6 + $0xc] sm:$0xf]
    %v272 = vld [vmem:[#allocation6 + $0x10] sm:$0xf]
    %v273 = vld [vmem:[#allocation6 + $0x14] sm:$0xf]
    %v274 = vld [vmem:[#allocation6 + $0x18] sm:$0xf]
    %v275 = vld [vmem:[#allocation6 + $0x1c] sm:$0xf]
    %v276 = vld [vmem:[#allocation6 + $0x20] sm:$0xf]
    %v277 = vld [vmem:[#allocation6 + $0x24] sm:$0xf]
    %v278 = vld [vmem:[#allocation6 + $0x28] sm:$0xf]
    %v279 = vld [vmem:[#allocation6 + $0x2c] sm:$0xf]
    %v280 = vld [vmem:[#allocation6 + $0x30] sm:$0xf]
    %v281 = vld [vmem:[#allocation6 + $0x34] sm:$0xf]
    %v282 = vld [vmem:[#allocation6 + $0x38] sm:$0xf]
    %v283 = vld [vmem:[#allocation6 + $0x3c] sm:$0xf]
    %s284 = scalar_lea.vmem [#allocation3], 8
    %v285 = vld [vmem:[%s284] sm:$0xf]
    %v286 = vunpack.c.l.bf16 %v285
    %v303 = vunpack.c.l.b16 %v268
    %v304 = vunpack.c.l.b16 %v269
    %v305 = vunpack.c.l.b16 %v270
    %v306 = vunpack.c.l.b16 %v271
    %v307 = vunpack.c.l.b16 %v272
    %v308 = vunpack.c.l.b16 %v273
    %v309 = vunpack.c.l.b16 %v274
    %v310 = vunpack.c.l.b16 %v275
    %v311 = vunpack.c.l.b16 %v276
    %v312 = vunpack.c.l.b16 %v277
    %v313 = vunpack.c.l.b16 %v278
    %v314 = vunpack.c.l.b16 %v279
    %v315 = vunpack.c.l.b16 %v280
    %v316 = vunpack.c.l.b16 %v281
    %v317 = vunpack.c.l.b16 %v282
    %v318 = vunpack.c.l.b16 %v283
    %v319 = vpack.c.b16 %v304, %v303
    %v320 = vpack.c.b16 %v306, %v305
    %v321 = vpack.c.b16 %v308, %v307
    %v322 = vpack.c.b16 %v310, %v309
    %v323 = vpack.c.b16 %v312, %v311
    %v324 = vpack.c.b16 %v314, %v313
    %v325 = vpack.c.b16 %v316, %v315
    %v326 = vpack.c.b16 %v318, %v317
    %335 = vmatprep.subr.bf16.mxu0 0
    %336 = vmatpush1.bf16.msra.mxu0 %v319
    %337 = vmatprep.subr.bf16.mxu0 0
    %338 = vmatpush1.bf16.msra.mxu0 %v320
    %339 = vmatprep.subr.bf16.mxu0 0
    %340 = vmatpush1.bf16.msra.mxu0 %v321
    %341 = vmatprep.subr.bf16.mxu0 0
    %342 = vmatpush1.bf16.msra.mxu0 %v322
    %343 = vmatprep.subr.bf16.mxu0 0
    %344 = vmatpush1.bf16.msra.mxu0 %v323
    %345 = vmatprep.subr.bf16.mxu0 0
    %346 = vmatpush1.bf16.msra.mxu0 %v324
    %347 = vmatprep.subr.bf16.mxu0 0
    %348 = vmatpush1.bf16.msra.mxu0 %v325
    %349 = vmatprep.subr.bf16.mxu0 0
    %350 = vmatpush1.bf16.msra.mxu0 %v326
    %351 = vmatprep.subr.bf16.mxu0 0
    %352 = vmatpush1.bf16.msra.mxu0 0
    %353 = vmatprep.subr.bf16.mxu0 0
    %354 = vmatpush1.bf16.msra.mxu0 0
    %355 = vmatprep.subr.bf16.mxu0 0
    %356 = vmatpush1.bf16.msra.mxu0 0
    %357 = vmatprep.subr.bf16.mxu0 0
    %358 = vmatpush1.bf16.msra.mxu0 0
    %359 = vmatprep.subr.bf16.mxu0 0
    %360 = vmatpush1.bf16.msra.mxu0 0
    %361 = vmatprep.subr.bf16.mxu0 0
    %362 = vmatpush1.bf16.msra.mxu0 0
    %363 = vmatprep.subr.bf16.mxu0 0
    %364 = vmatpush1.bf16.msra.mxu0 0
    %365 = vmatprep.subr.bf16.mxu0 0
    %366 = vmatpush1.bf16.msra.mxu0 0
    %367 = vmatprep.mubr.bf16.mxu0 0
    %368 = vmatmul.mubr.bf16.gmra.mrb[0].mxu0 %v267
    %v369 = vpop.f32.mrb[0].mxu0
    %v370 = vadd.f32 %v286, %v369
    %v371 = vpop.f32.mrb[0].mxu0
    %v372 = vpop.f32.mrb[0].mxu0
    %v373 = vpop.f32.mrb[0].mxu0
    %374 = vdwg.mxu0
    %v375 = vtanh.pop %v370
    %s376 = scalar_lea.vmem [#allocation8], 16
    %377 = vst [vmem:[%s376] sm:$0xff] %v375
    %v378 = vpack.c.bf16 %v375, %v375
    %v379 = vld [vmem:[#allocation6] sm:$0xf]
    %v380 = vld [vmem:[#allocation6 + $0x4] sm:$0xf]
    %v381 = vld [vmem:[#allocation6 + $0x8] sm:$0xf]
    %v382 = vld [vmem:[#allocation6 + $0xc] sm:$0xf]
    %v383 = vld [vmem:[#allocation6 + $0x10] sm:$0xf]
    %v384 = vld [vmem:[#allocation6 + $0x14] sm:$0xf]
    %v385 = vld [vmem:[#allocation6 + $0x18] sm:$0xf]
    %v386 = vld [vmem:[#allocation6 + $0x1c] sm:$0xf]
    %v387 = vld [vmem:[#allocation6 + $0x20] sm:$0xf]
    %v388 = vld [vmem:[#allocation6 + $0x24] sm:$0xf]
    %v389 = vld [vmem:[#allocation6 + $0x28] sm:$0xf]
    %v390 = vld [vmem:[#allocation6 + $0x2c] sm:$0xf]
    %v391 = vld [vmem:[#allocation6 + $0x30] sm:$0xf]
    %v392 = vld [vmem:[#allocation6 + $0x34] sm:$0xf]
    %v393 = vld [vmem:[#allocation6 + $0x38] sm:$0xf]
    %v394 = vld [vmem:[#allocation6 + $0x3c] sm:$0xf]
    %s395 = scalar_lea.vmem [#allocation3], 12
    %v396 = vld [vmem:[%s395] sm:$0xf]
    %v397 = vunpack.c.l.bf16 %v396
    %v414 = vunpack.c.l.b16 %v379
    %v415 = vunpack.c.l.b16 %v380
    %v416 = vunpack.c.l.b16 %v381
    %v417 = vunpack.c.l.b16 %v382
    %v418 = vunpack.c.l.b16 %v383
    %v419 = vunpack.c.l.b16 %v384
    %v420 = vunpack.c.l.b16 %v385
    %v421 = vunpack.c.l.b16 %v386
    %v422 = vunpack.c.l.b16 %v387
    %v423 = vunpack.c.l.b16 %v388
    %v424 = vunpack.c.l.b16 %v389
    %v425 = vunpack.c.l.b16 %v390
    %v426 = vunpack.c.l.b16 %v391
    %v427 = vunpack.c.l.b16 %v392
    %v428 = vunpack.c.l.b16 %v393
    %v429 = vunpack.c.l.b16 %v394
    %v430 = vpack.c.b16 %v415, %v414
    %v431 = vpack.c.b16 %v417, %v416
    %v432 = vpack.c.b16 %v419, %v418
    %v433 = vpack.c.b16 %v421, %v420
    %v434 = vpack.c.b16 %v423, %v422
    %v435 = vpack.c.b16 %v425, %v424
    %v436 = vpack.c.b16 %v427, %v426
    %v437 = vpack.c.b16 %v429, %v428
    %446 = vmatprep.subr.bf16.mxu0 0
    %447 = vmatpush1.bf16.msra.mxu0 %v430
    %448 = vmatprep.subr.bf16.mxu0 0
    %449 = vmatpush1.bf16.msra.mxu0 %v431
    %450 = vmatprep.subr.bf16.mxu0 0
    %451 = vmatpush1.bf16.msra.mxu0 %v432
    %452 = vmatprep.subr.bf16.mxu0 0
    %453 = vmatpush1.bf16.msra.mxu0 %v433
    %454 = vmatprep.subr.bf16.mxu0 0
    %455 = vmatpush1.bf16.msra.mxu0 %v434
    %456 = vmatprep.subr.bf16.mxu0 0
    %457 = vmatpush1.bf16.msra.mxu0 %v435
    %458 = vmatprep.subr.bf16.mxu0 0
    %459 = vmatpush1.bf16.msra.mxu0 %v436
    %460 = vmatprep.subr.bf16.mxu0 0
    %461 = vmatpush1.bf16.msra.mxu0 %v437
    %462 = vmatprep.subr.bf16.mxu0 0
    %463 = vmatpush1.bf16.msra.mxu0 0
    %464 = vmatprep.subr.bf16.mxu0 0
    %465 = vmatpush1.bf16.msra.mxu0 0
    %466 = vmatprep.subr.bf16.mxu0 0
    %467 = vmatpush1.bf16.msra.mxu0 0
    %468 = vmatprep.subr.bf16.mxu0 0
    %469 = vmatpush1.bf16.msra.mxu0 0
    %470 = vmatprep.subr.bf16.mxu0 0
    %471 = vmatpush1.bf16.msra.mxu0 0
    %472 = vmatprep.subr.bf16.mxu0 0
    %473 = vmatpush1.bf16.msra.mxu0 0
    %474 = vmatprep.subr.bf16.mxu0 0
    %475 = vmatpush1.bf16.msra.mxu0 0
    %476 = vmatprep.subr.bf16.mxu0 0
    %477 = vmatpush1.bf16.msra.mxu0 0
    %478 = vmatprep.mubr.bf16.mxu0 0
    %479 = vmatmul.mubr.bf16.gmra.mrb[0].mxu0 %v378
    %v480 = vpop.f32.mrb[0].mxu0
    %v481 = vadd.f32 %v397, %v480
    %v482 = vpop.f32.mrb[0].mxu0
    %v483 = vpop.f32.mrb[0].mxu0
    %v484 = vpop.f32.mrb[0].mxu0
    %485 = vdwg.mxu0
    %v486 = vtanh.pop %v481
    %s487 = scalar_lea.vmem [#allocation8], 24
    %488 = vst [vmem:[%s487] sm:$0xff] %v486
    %v489 = vpack.c.bf16 %v486, %v486
    %v490 = vld [vmem:[#allocation6] sm:$0xf]
    %v491 = vld [vmem:[#allocation6 + $0x4] sm:$0xf]
    %v492 = vld [vmem:[#allocation6 + $0x8] sm:$0xf]
    %v493 = vld [vmem:[#allocation6 + $0xc] sm:$0xf]
    %v494 = vld [vmem:[#allocation6 + $0x10] sm:$0xf]
    %v495 = vld [vmem:[#allocation6 + $0x14] sm:$0xf]
    %v496 = vld [vmem:[#allocation6 + $0x18] sm:$0xf]
    %v497 = vld [vmem:[#allocation6 + $0x1c] sm:$0xf]
    %v498 = vld [vmem:[#allocation6 + $0x20] sm:$0xf]
    %v499 = vld [vmem:[#allocation6 + $0x24] sm:$0xf]
    %v500 = vld [vmem:[#allocation6 + $0x28] sm:$0xf]
    %v501 = vld [vmem:[#allocation6 + $0x2c] sm:$0xf]
    %v502 = vld [vmem:[#allocation6 + $0x30] sm:$0xf]
    %v503 = vld [vmem:[#allocation6 + $0x34] sm:$0xf]
    %v504 = vld [vmem:[#allocation6 + $0x38] sm:$0xf]
    %v505 = vld [vmem:[#allocation6 + $0x3c] sm:$0xf]
    %s506 = scalar_lea.vmem [#allocation3], 16
    %v507 = vld [vmem:[%s506] sm:$0xf]
    %v508 = vunpack.c.l.bf16 %v507
    %v525 = vunpack.c.l.b16 %v490
    %v526 = vunpack.c.l.b16 %v491
    %v527 = vunpack.c.l.b16 %v492
    %v528 = vunpack.c.l.b16 %v493
    %v529 = vunpack.c.l.b16 %v494
    %v530 = vunpack.c.l.b16 %v495
    %v531 = vunpack.c.l.b16 %v496
    %v532 = vunpack.c.l.b16 %v497
    %v533 = vunpack.c.l.b16 %v498
    %v534 = vunpack.c.l.b16 %v499
    %v535 = vunpack.c.l.b16 %v500
    %v536 = vunpack.c.l.b16 %v501
    %v537 = vunpack.c.l.b16 %v502
    %v538 = vunpack.c.l.b16 %v503
    %v539 = vunpack.c.l.b16 %v504
    %v540 = vunpack.c.l.b16 %v505
    %v541 = vpack.c.b16 %v526, %v525
    %v542 = vpack.c.b16 %v528, %v527
    %v543 = vpack.c.b16 %v530, %v529
    %v544 = vpack.c.b16 %v532, %v531
    %v545 = vpack.c.b16 %v534, %v533
    %v546 = vpack.c.b16 %v536, %v535
    %v547 = vpack.c.b16 %v538, %v537
    %v548 = vpack.c.b16 %v540, %v539
    %557 = vmatprep.subr.bf16.mxu0 0
    %558 = vmatpush1.bf16.msra.mxu0 %v541
    %559 = vmatprep.subr.bf16.mxu0 0
    %560 = vmatpush1.bf16.msra.mxu0 %v542
    %561 = vmatprep.subr.bf16.mxu0 0
    %562 = vmatpush1.bf16.msra.mxu0 %v543
    %563 = vmatprep.subr.bf16.mxu0 0
    %564 = vmatpush1.bf16.msra.mxu0 %v544
    %565 = vmatprep.subr.bf16.mxu0 0
    %566 = vmatpush1.bf16.msra.mxu0 %v545
    %567 = vmatprep.subr.bf16.mxu0 0
    %568 = vmatpush1.bf16.msra.mxu0 %v546
    %569 = vmatprep.subr.bf16.mxu0 0
    %570 = vmatpush1.bf16.msra.mxu0 %v547
    %571 = vmatprep.subr.bf16.mxu0 0
    %572 = vmatpush1.bf16.msra.mxu0 %v548
    %573 = vmatprep.subr.bf16.mxu0 0
    %574 = vmatpush1.bf16.msra.mxu0 0
    %575 = vmatprep.subr.bf16.mxu0 0
    %576 = vmatpush1.bf16.msra.mxu0 0
    %577 = vmatprep.subr.bf16.mxu0 0
    %578 = vmatpush1.bf16.msra.mxu0 0
    %579 = vmatprep.subr.bf16.mxu0 0
    %580 = vmatpush1.bf16.msra.mxu0 0
    %581 = vmatprep.subr.bf16.mxu0 0
    %582 = vmatpush1.bf16.msra.mxu0 0
    %583 = vmatprep.subr.bf16.mxu0 0
    %584 = vmatpush1.bf16.msra.mxu0 0
    %585 = vmatprep.subr.bf16.mxu0 0
    %586 = vmatpush1.bf16.msra.mxu0 0
    %587 = vmatprep.subr.bf16.mxu0 0
    %588 = vmatpush1.bf16.msra.mxu0 0
    %589 = vmatprep.mubr.bf16.mxu0 0
    %590 = vmatmul.mubr.bf16.gmra.mrb[0].mxu0 %v489
    %v591 = vpop.f32.mrb[0].mxu0
    %v592 = vadd.f32 %v508, %v591
    %v593 = vpop.f32.mrb[0].mxu0
    %v594 = vpop.f32.mrb[0].mxu0
    %v595 = vpop.f32.mrb[0].mxu0
    %596 = vdwg.mxu0
    %v597 = vtanh.pop %v592
    %s598 = scalar_lea.vmem [#allocation8], 32
    %599 = vst [vmem:[%s598] sm:$0xff] %v597
    %v600 = vpack.c.bf16 %v597, %v597
    %v601 = vld [vmem:[#allocation6] sm:$0xf]
    %v602 = vld [vmem:[#allocation6 + $0x4] sm:$0xf]
    %v603 = vld [vmem:[#allocation6 + $0x8] sm:$0xf]
    %v604 = vld [vmem:[#allocation6 + $0xc] sm:$0xf]
    %v605 = vld [vmem:[#allocation6 + $0x10] sm:$0xf]
    %v606 = vld [vmem:[#allocation6 + $0x14] sm:$0xf]
    %v607 = vld [vmem:[#allocation6 + $0x18] sm:$0xf]
    %v608 = vld [vmem:[#allocation6 + $0x1c] sm:$0xf]
    %v609 = vld [vmem:[#allocation6 + $0x20] sm:$0xf]
    %v610 = vld [vmem:[#allocation6 + $0x24] sm:$0xf]
    %v611 = vld [vmem:[#allocation6 + $0x28] sm:$0xf]
    %v612 = vld [vmem:[#allocation6 + $0x2c] sm:$0xf]
    %v613 = vld [vmem:[#allocation6 + $0x30] sm:$0xf]
    %v614 = vld [vmem:[#allocation6 + $0x34] sm:$0xf]
    %v615 = vld [vmem:[#allocation6 + $0x38] sm:$0xf]
    %v616 = vld [vmem:[#allocation6 + $0x3c] sm:$0xf]
    %s617 = scalar_lea.vmem [#allocation3], 20
    %v618 = vld [vmem:[%s617] sm:$0xf]
    %v619 = vunpack.c.l.bf16 %v618
    %v636 = vunpack.c.l.b16 %v601
    %v637 = vunpack.c.l.b16 %v602
    %v638 = vunpack.c.l.b16 %v603
    %v639 = vunpack.c.l.b16 %v604
    %v640 = vunpack.c.l.b16 %v605
    %v641 = vunpack.c.l.b16 %v606
    %v642 = vunpack.c.l.b16 %v607
    %v643 = vunpack.c.l.b16 %v608
    %v644 = vunpack.c.l.b16 %v609
    %v645 = vunpack.c.l.b16 %v610
    %v646 = vunpack.c.l.b16 %v611
    %v647 = vunpack.c.l.b16 %v612
    %v648 = vunpack.c.l.b16 %v613
    %v649 = vunpack.c.l.b16 %v614
    %v650 = vunpack.c.l.b16 %v615
    %v651 = vunpack.c.l.b16 %v616
    %v652 = vpack.c.b16 %v637, %v636
    %v653 = vpack.c.b16 %v639, %v638
    %v654 = vpack.c.b16 %v641, %v640
    %v655 = vpack.c.b16 %v643, %v642
    %v656 = vpack.c.b16 %v645, %v644
    %v657 = vpack.c.b16 %v647, %v646
    %v658 = vpack.c.b16 %v649, %v648
    %v659 = vpack.c.b16 %v651, %v650
    %668 = vmatprep.subr.bf16.mxu0 0
    %669 = vmatpush1.bf16.msra.mxu0 %v652
    %670 = vmatprep.subr.bf16.mxu0 0
    %671 = vmatpush1.bf16.msra.mxu0 %v653
    %672 = vmatprep.subr.bf16.mxu0 0
    %673 = vmatpush1.bf16.msra.mxu0 %v654
    %674 = vmatprep.subr.bf16.mxu0 0
    %675 = vmatpush1.bf16.msra.mxu0 %v655
    %676 = vmatprep.subr.bf16.mxu0 0
    %677 = vmatpush1.bf16.msra.mxu0 %v656
    %678 = vmatprep.subr.bf16.mxu0 0
    %679 = vmatpush1.bf16.msra.mxu0 %v657
    %680 = vmatprep.subr.bf16.mxu0 0
    %681 = vmatpush1.bf16.msra.mxu0 %v658
    %682 = vmatprep.subr.bf16.mxu0 0
    %683 = vmatpush1.bf16.msra.mxu0 %v659
    %684 = vmatprep.subr.bf16.mxu0 0
    %685 = vmatpush1.bf16.msra.mxu0 0
    %686 = vmatprep.subr.bf16.mxu0 0
    %687 = vmatpush1.bf16.msra.mxu0 0
    %688 = vmatprep.subr.bf16.mxu0 0
    %689 = vmatpush1.bf16.msra.mxu0 0
    %690 = vmatprep.subr.bf16.mxu0 0
    %691 = vmatpush1.bf16.msra.mxu0 0
    %692 = vmatprep.subr.bf16.mxu0 0
    %693 = vmatpush1.bf16.msra.mxu0 0
    %694 = vmatprep.subr.bf16.mxu0 0
    %695 = vmatpush1.bf16.msra.mxu0 0
    %696 = vmatprep.subr.bf16.mxu0 0
    %697 = vmatpush1.bf16.msra.mxu0 0
    %698 = vmatprep.subr.bf16.mxu0 0
    %699 = vmatpush1.bf16.msra.mxu0 0
    %700 = vmatprep.mubr.bf16.mxu0 0
    %701 = vmatmul.mubr.bf16.gmra.mrb[0].mxu0 %v600
    %v702 = vpop.f32.mrb[0].mxu0
    %v703 = vadd.f32 %v619, %v702
    %v704 = vpop.f32.mrb[0].mxu0
    %v705 = vpop.f32.mrb[0].mxu0
    %v706 = vpop.f32.mrb[0].mxu0
    %707 = vdwg.mxu0
    %v708 = vtanh.pop %v703
    %s709 = scalar_lea.vmem [#allocation8], 40
    %710 = vst [vmem:[%s709] sm:$0xff] %v708
    %v711 = vpack.c.bf16 %v708, %v708
    %v712 = vld [vmem:[#allocation6] sm:$0xf]
    %v713 = vld [vmem:[#allocation6 + $0x4] sm:$0xf]
    %v714 = vld [vmem:[#allocation6 + $0x8] sm:$0xf]
    %v715 = vld [vmem:[#allocation6 + $0xc] sm:$0xf]
    %v716 = vld [vmem:[#allocation6 + $0x10] sm:$0xf]
    %v717 = vld [vmem:[#allocation6 + $0x14] sm:$0xf]
    %v718 = vld [vmem:[#allocation6 + $0x18] sm:$0xf]
    %v719 = vld [vmem:[#allocation6 + $0x1c] sm:$0xf]
    %v720 = vld [vmem:[#allocation6 + $0x20] sm:$0xf]
    %v721 = vld [vmem:[#allocation6 + $0x24] sm:$0xf]
    %v722 = vld [vmem:[#allocation6 + $0x28] sm:$0xf]
    %v723 = vld [vmem:[#allocation6 + $0x2c] sm:$0xf]
    %v724 = vld [vmem:[#allocation6 + $0x30] sm:$0xf]
    %v725 = vld [vmem:[#allocation6 + $0x34] sm:$0xf]
    %v726 = vld [vmem:[#allocation6 + $0x38] sm:$0xf]
    %v727 = vld [vmem:[#allocation6 + $0x3c] sm:$0xf]
    %s728 = scalar_lea.vmem [#allocation3], 24
    %v729 = vld [vmem:[%s728] sm:$0xf]
    %v730 = vunpack.c.l.bf16 %v729
    %v747 = vunpack.c.l.b16 %v712
    %v748 = vunpack.c.l.b16 %v713
    %v749 = vunpack.c.l.b16 %v714
    %v750 = vunpack.c.l.b16 %v715
    %v751 = vunpack.c.l.b16 %v716
    %v752 = vunpack.c.l.b16 %v717
    %v753 = vunpack.c.l.b16 %v718
    %v754 = vunpack.c.l.b16 %v719
    %v755 = vunpack.c.l.b16 %v720
    %v756 = vunpack.c.l.b16 %v721
    %v757 = vunpack.c.l.b16 %v722
    %v758 = vunpack.c.l.b16 %v723
    %v759 = vunpack.c.l.b16 %v724
    %v760 = vunpack.c.l.b16 %v725
    %v761 = vunpack.c.l.b16 %v726
    %v762 = vunpack.c.l.b16 %v727
    %v763 = vpack.c.b16 %v748, %v747
    %v764 = vpack.c.b16 %v750, %v749
    %v765 = vpack.c.b16 %v752, %v751
    %v766 = vpack.c.b16 %v754, %v753
    %v767 = vpack.c.b16 %v756, %v755
    %v768 = vpack.c.b16 %v758, %v757
    %v769 = vpack.c.b16 %v760, %v759
    %v770 = vpack.c.b16 %v762, %v761
    %779 = vmatprep.subr.bf16.mxu0 0
    %780 = vmatpush1.bf16.msra.mxu0 %v763
    %781 = vmatprep.subr.bf16.mxu0 0
    %782 = vmatpush1.bf16.msra.mxu0 %v764
    %783 = vmatprep.subr.bf16.mxu0 0
    %784 = vmatpush1.bf16.msra.mxu0 %v765
    %785 = vmatprep.subr.bf16.mxu0 0
    %786 = vmatpush1.bf16.msra.mxu0 %v766
    %787 = vmatprep.subr.bf16.mxu0 0
    %788 = vmatpush1.bf16.msra.mxu0 %v767
    %789 = vmatprep.subr.bf16.mxu0 0
    %790 = vmatpush1.bf16.msra.mxu0 %v768
    %791 = vmatprep.subr.bf16.mxu0 0
    %792 = vmatpush1.bf16.msra.mxu0 %v769
    %793 = vmatprep.subr.bf16.mxu0 0
    %794 = vmatpush1.bf16.msra.mxu0 %v770
    %795 = vmatprep.subr.bf16.mxu0 0
    %796 = vmatpush1.bf16.msra.mxu0 0
    %797 = vmatprep.subr.bf16.mxu0 0
    %798 = vmatpush1.bf16.msra.mxu0 0
    %799 = vmatprep.subr.bf16.mxu0 0
    %800 = vmatpush1.bf16.msra.mxu0 0
    %801 = vmatprep.subr.bf16.mxu0 0
    %802 = vmatpush1.bf16.msra.mxu0 0
    %803 = vmatprep.subr.bf16.mxu0 0
    %804 = vmatpush1.bf16.msra.mxu0 0
    %805 = vmatprep.subr.bf16.mxu0 0
    %806 = vmatpush1.bf16.msra.mxu0 0
    %807 = vmatprep.subr.bf16.mxu0 0
    %808 = vmatpush1.bf16.msra.mxu0 0
    %809 = vmatprep.subr.bf16.mxu0 0
    %810 = vmatpush1.bf16.msra.mxu0 0
    %811 = vmatprep.mubr.bf16.mxu0 0
    %812 = vmatmul.mubr.bf16.gmra.mrb[0].mxu0 %v711
    %v813 = vpop.f32.mrb[0].mxu0
    %v814 = vadd.f32 %v730, %v813
    %v815 = vpop.f32.mrb[0].mxu0
    %v816 = vpop.f32.mrb[0].mxu0
    %v817 = vpop.f32.mrb[0].mxu0
    %818 = vdwg.mxu0
    %v819 = vtanh.pop %v814
    %s820 = scalar_lea.vmem [#allocation8], 48
    %821 = vst [vmem:[%s820] sm:$0xff] %v819
    %v822 = vpack.c.bf16 %v819, %v819
    %v823 = vld [vmem:[#allocation6] sm:$0xf]
    %v824 = vld [vmem:[#allocation6 + $0x4] sm:$0xf]
    %v825 = vld [vmem:[#allocation6 + $0x8] sm:$0xf]
    %v826 = vld [vmem:[#allocation6 + $0xc] sm:$0xf]
    %v827 = vld [vmem:[#allocation6 + $0x10] sm:$0xf]
    %v828 = vld [vmem:[#allocation6 + $0x14] sm:$0xf]
    %v829 = vld [vmem:[#allocation6 + $0x18] sm:$0xf]
    %v830 = vld [vmem:[#allocation6 + $0x1c] sm:$0xf]
    %v831 = vld [vmem:[#allocation6 + $0x20] sm:$0xf]
    %v832 = vld [vmem:[#allocation6 + $0x24] sm:$0xf]
    %v833 = vld [vmem:[#allocation6 + $0x28] sm:$0xf]
    %v834 = vld [vmem:[#allocation6 + $0x2c] sm:$0xf]
    %v835 = vld [vmem:[#allocation6 + $0x30] sm:$0xf]
    %v836 = vld [vmem:[#allocation6 + $0x34] sm:$0xf]
    %v837 = vld [vmem:[#allocation6 + $0x38] sm:$0xf]
    %v838 = vld [vmem:[#allocation6 + $0x3c] sm:$0xf]
    %s839 = scalar_lea.vmem [#allocation3], 28
    %v840 = vld [vmem:[%s839] sm:$0xf]
    %v841 = vunpack.c.l.bf16 %v840
    %v858 = vunpack.c.l.b16 %v823
    %v859 = vunpack.c.l.b16 %v824
    %v860 = vunpack.c.l.b16 %v825
    %v861 = vunpack.c.l.b16 %v826
    %v862 = vunpack.c.l.b16 %v827
    %v863 = vunpack.c.l.b16 %v828
    %v864 = vunpack.c.l.b16 %v829
    %v865 = vunpack.c.l.b16 %v830
    %v866 = vunpack.c.l.b16 %v831
    %v867 = vunpack.c.l.b16 %v832
    %v868 = vunpack.c.l.b16 %v833
    %v869 = vunpack.c.l.b16 %v834
    %v870 = vunpack.c.l.b16 %v835
    %v871 = vunpack.c.l.b16 %v836
    %v872 = vunpack.c.l.b16 %v837
    %v873 = vunpack.c.l.b16 %v838
    %v874 = vpack.c.b16 %v859, %v858
    %v875 = vpack.c.b16 %v861, %v860
    %v876 = vpack.c.b16 %v863, %v862
    %v877 = vpack.c.b16 %v865, %v864
    %v878 = vpack.c.b16 %v867, %v866
    %v879 = vpack.c.b16 %v869, %v868
    %v880 = vpack.c.b16 %v871, %v870
    %v881 = vpack.c.b16 %v873, %v872
    %890 = vmatprep.subr.bf16.mxu0 0
    %891 = vmatpush1.bf16.msra.mxu0 %v874
    %892 = vmatprep.subr.bf16.mxu0 0
    %893 = vmatpush1.bf16.msra.mxu0 %v875
    %894 = vmatprep.subr.bf16.mxu0 0
    %895 = vmatpush1.bf16.msra.mxu0 %v876
    %896 = vmatprep.subr.bf16.mxu0 0
    %897 = vmatpush1.bf16.msra.mxu0 %v877
    %898 = vmatprep.subr.bf16.mxu0 0
    %899 = vmatpush1.bf16.msra.mxu0 %v878
    %900 = vmatprep.subr.bf16.mxu0 0
    %901 = vmatpush1.bf16.msra.mxu0 %v879
    %902 = vmatprep.subr.bf16.mxu0 0
    %903 = vmatpush1.bf16.msra.mxu0 %v880
    %904 = vmatprep.subr.bf16.mxu0 0
    %905 = vmatpush1.bf16.msra.mxu0 %v881
    %906 = vmatprep.subr.bf16.mxu0 0
    %907 = vmatpush1.bf16.msra.mxu0 0
    %908 = vmatprep.subr.bf16.mxu0 0
    %909 = vmatpush1.bf16.msra.mxu0 0
    %910 = vmatprep.subr.bf16.mxu0 0
    %911 = vmatpush1.bf16.msra.mxu0 0
    %912 = vmatprep.subr.bf16.mxu0 0
    %913 = vmatpush1.bf16.msra.mxu0 0
    %914 = vmatprep.subr.bf16.mxu0 0
    %915 = vmatpush1.bf16.msra.mxu0 0
    %916 = vmatprep.subr.bf16.mxu0 0
    %917 = vmatpush1.bf16.msra.mxu0 0
    %918 = vmatprep.subr.bf16.mxu0 0
    %919 = vmatpush1.bf16.msra.mxu0 0
    %920 = vmatprep.subr.bf16.mxu0 0
    %921 = vmatpush1.bf16.msra.mxu0 0
    %922 = vmatprep.mubr.bf16.mxu0 0
    %923 = vmatmul.mubr.bf16.gmra.mrb[0].mxu0 %v822
    %v924 = vpop.f32.mrb[0].mxu0
    %v925 = vadd.f32 %v841, %v924
    %v926 = vpop.f32.mrb[0].mxu0
    %v927 = vpop.f32.mrb[0].mxu0
    %v928 = vpop.f32.mrb[0].mxu0
    %929 = vdwg.mxu0
    %v930 = vtanh.pop %v925
    %s931 = scalar_lea.vmem [#allocation8], 56
    %932 = vst [vmem:[%s931] sm:$0xff] %v930
    %933 = vst [vmem:[#allocation2] sm:$0xff] %v930
    // Predicated region
    $region22: #{tpu_custom_call.1} parent=1 // pred_check
      _
    $region23: #{tpu_custom_call.1} parent=1 // pred_check_branch
      %935 = sbr.rel (0) target = $region25
    $region24: #{tpu_custom_call.1} parent=1 // pred_region
      %s937 = ssub.s32 1024, 1024
      %938 = vsyncadd [#allocation5], %s937
      %s939 = sshll.u32 [#allocation8], 4
      %s940 = int_to_ptr.vmem [resolvable:$true] %s939
      %945 = dma.vmem_to_hbm [thread:$0]  %s940, 1024, %s2, [#allocation5], 128, 128, 8
    $region25: #{tpu_custom_call.1} parent=1 // pred_fallthru
      _
    // Predicated region
    $region26: #{tpu_custom_call.1} parent=1 // pred_check
      _
    $region27: #{tpu_custom_call.1} parent=1 // pred_check_branch
      %947 = sbr.rel (0) target = $region29
    $region28: #{tpu_custom_call.1} parent=1 // pred_region
      %948 = dma.done [#allocation5], 1024
    $region29: #{tpu_custom_call.1} parent=1 // pred_fallthru
      _
    %949 = vsyncpa [#allocation4], 1
    %950 = vsyncpa [#allocation7], 1
    %951 = vsyncpa [#allocation5], 1

</llo_original>
